<compile_context>
chip_gen: v7x
topology: tpu7x:2x2x1
jax: 0.10.0
libtpu: 0.0.40
codegen_flags: <defaults>
</compile_context>

<pallas_src>
import jax
import jax.numpy as jnp
from jax.experimental import pallas as pl
from jax.experimental.pallas import tpu as pltpu

_LANES = 128
_SUBLANE_TILE = 8                       # pad granularity: 8 x 128 = one f32 vreg
_TILE_ROWS = 512                        # tiled path: (512, 128) f32 = 256 KiB/block
_SMALL_LIMIT_BYTES = 4 << 20            # below this: single whole-array VMEM block


def _copy_kernel(x_ref, o_ref):
    # Pure pass-through: the original forward() has no compute.
    o_ref[...] = x_ref[...]


def _lane_dense_pad(flat, row_multiple):
    """Pad a 1-D array to a multiple of row_multiple*128 elems, reshape (-1, 128)."""
    n = flat.shape[0]
    m = row_multiple * _LANES
    pad = (-n) % m
    if pad:
        flat = jnp.pad(flat, (0, pad))
    return flat.reshape(-1, _LANES)


@jax.jit
def _identity_small(x):
    """Whole-array single-block copy for small inputs (<= _SMALL_LIMIT_BYTES)."""
    orig_shape, orig_size = x.shape, x.size
    x2d = _lane_dense_pad(x.reshape(-1), _SUBLANE_TILE)   # lane-dense (R, 128)
    y2d = pl.pallas_call(
        _copy_kernel,
        out_shape=jax.ShapeDtypeStruct(x2d.shape, x2d.dtype),
        # Whole array as one VMEM-resident block; no grid, no pipelining —
        # working set is far below the scoped VMEM limit at this size.
        in_specs=[pl.BlockSpec(memory_space=pltpu.VMEM)],
        out_specs=pl.BlockSpec(memory_space=pltpu.VMEM),
        input_output_aliases={0: 0},
        cost_estimate=pl.CostEstimate(
            flops=0, transcendentals=0,
            bytes_accessed=2 * x2d.size * x2d.dtype.itemsize),
    )(x2d)
    return y2d.reshape(-1)[:orig_size].reshape(orig_shape)


@jax.jit
def _identity_tiled(x):
    """Tiled, 'parallel'-marked copy for large inputs (scaling path from review)."""
    orig_shape, orig_size = x.shape, x.size
    x2d = _lane_dense_pad(x.reshape(-1), _TILE_ROWS)       # rows % _TILE_ROWS == 0
    rows = x2d.shape[0]
    y2d = pl.pallas_call(
        _copy_kernel,
        out_shape=jax.ShapeDtypeStruct(x2d.shape, x2d.dtype),
        grid=(rows // _TILE_ROWS,),
        in_specs=[pl.BlockSpec((_TILE_ROWS, _LANES), lambda i: (i, 0))],
        out_specs=pl.BlockSpec((_TILE_ROWS, _LANES), lambda i: (i, 0)),
        input_output_aliases={0: 0},
        compiler_params=pltpu.CompilerParams(
            # Shards the copy across both TensorCores on v7x; no-op on v5e/v6e.
            dimension_semantics=("parallel",),
            # Headroom for 2 in + 2 out double-buffered 256 KiB blocks.
            vmem_limit_bytes=16 << 20),
        cost_estimate=pl.CostEstimate(
            flops=0, transcendentals=0,
            bytes_accessed=2 * x2d.size * x2d.dtype.itemsize),
    )(x2d)
    return y2d.reshape(-1)[:orig_size].reshape(orig_shape)


def pallas_identity(x):
    """Optional demonstration kernel: copies x through VMEM unchanged.

    Kept OUT of the semantic path of transition_forward.  Dispatches to a
    whole-array single-block copy for small inputs and a tiled, parallel copy
    for large ones.
    """
    if x.size == 0:
        return x  # nothing to copy; a (R, 0) block would not lower
    if x.size * x.dtype.itemsize <= _SMALL_LIMIT_BYTES:
        return _identity_small(x)
    return _identity_tiled(x)


def transition_forward(*args, **kwargs):
    """Exact semantic equivalent of Transition.forward: does nothing, returns None.

    No pallas_call is launched here — a no-op module's fastest implementation
    is no kernel at all (avoids the ~0.35 µs launch overhead plus the HBM
    round-trip of the arguments).
    """
    # TODO(synk): PyTorch forward body is `pass`; nothing to compute.
    return None


if __name__ == "__main__":
    key = jax.random.PRNGKey(0)
    x = jax.random.normal(key, (2, 4, 16, 16), dtype=jnp.float32)  # NCHW

    # Semantic path: Transition.forward(...) returns None, same as PyTorch,
    # with zero kernel launches.
    out = transition_forward(x)
    assert out is None

    # Demonstration 1: small, 128-multiple input -> whole-array VMEM block.
    y = pallas_identity(x)
    jax.block_until_ready(y)
    assert y.shape == x.shape and y.dtype == x.dtype
    assert bool(jnp.allclose(y, x))

    # Demonstration 2: non-128-multiple size exercises the padded fallback.
    k2 = jax.random.PRNGKey(1)
    x_odd = jax.random.normal(k2, (2, 4, 16, 15), dtype=jnp.float32)  # 1920 elems
    y_odd = pallas_identity(x_odd)
    jax.block_until_ready(y_odd)
    assert y_odd.shape == x_odd.shape
    assert bool(jnp.allclose(y_odd, x_odd))

    # Demonstration 3: tiled, 'parallel' scaling path (exercised directly).
    k3 = jax.random.PRNGKey(2)
    x_big = jax.random.normal(k3, (4096, 128), dtype=jnp.float32)  # 2 MiB
    y_big = _identity_tiled(x_big)
    jax.block_until_ready(y_big)
    assert y_big.shape == x_big.shape
    assert bool(jnp.allclose(y_big, x_big))

    print("KERNEL_OK")
</pallas_src>

<mosaic_0001>
module attributes {stable_mosaic.version = 11 : i64} {
  func.func @_copy_kernel(%arg0: memref<16x128xf32, #tpu.memory_space<vmem>>, %arg1: memref<16x128xf32, #tpu.memory_space<vmem>>) attributes {dimension_semantics = [], scalar_prefetch = 0 : i64, scratch_operands = 0 : i64, tpu.core_type = #tpu.core_type<tc>} {
    %c0 = arith.constant 0 : index
    %c0_0 = arith.constant 0 : index
    %0 = vector.load %arg0[%c0, %c0_0] : memref<16x128xf32, #tpu.memory_space<vmem>>, vector<16x128xf32>
    %c0_1 = arith.constant 0 : index
    %c0_2 = arith.constant 0 : index
    %1 = vector.load %arg1[%c0_1, %c0_2] : memref<16x128xf32, #tpu.memory_space<vmem>>, vector<16x128xf32>
    tpu.vector_store %arg1[%c0_1, %c0_2], %0 {strides = array<i32>} : memref<16x128xf32, #tpu.memory_space<vmem>>, vector<16x128xf32>,
    return
  }
}

</mosaic_0001>

<llo_original>
// kernel: _identity_small.1
$region0: #{_identity_small.1}
  #allocation0 [shape = 'u32[]', space=smem, size = 0x4, offset = 0x4, fixed_abs, tag = 'smem constant byte address 0x4 - core index']
  #allocation1 [shape = 'u32[144,128]{1,0:T(1,128)}', space=vmem, size = 0x12000, scoped, tag = 'internal scratch']
  %s0 = inlined_call_operand.vmem [shape: f32[16,128], index: 0, kind: input, shape index: {}, may-alias: {0,1}]
  %s1 = inlined_call_operand.vmem [shape: f32[16,128], index: 1, kind: output, shape index: {}, may-alias: {0,1}]
  %s2 = sld [smem:[#allocation0]]
  $region14: #{_identity_small.1} parent=0
    _
  %s4 = ssub.s32 1, %s2
  %s5 = scalar_select 0, %s4, %s2
  // Predicated region
  $region2: #{_identity_small.1} parent=0 // pred_check
    _
  $region3: #{_identity_small.1} parent=0 // pred_check_branch
    %7 = sbr.rel (0) target = $region5
  $region4: #{_identity_small.1} parent=0 // pred_region
    _
  $region5: #{_identity_small.1} parent=0 // pred_fallthru
    _
  %v8 = vld [vmem:[%s0] sm:$0xff]
  %v9 = vld [vmem:[%s0 + $0x8] sm:$0xff]
  %10 = vst [vmem:[%s1] sm:$0xff] %v8
  %11 = vst [vmem:[%s1 + $0x8] sm:$0xff] %v9
  // Predicated region
  $region6: #{_identity_small.1} parent=0 // pred_check
    _
  $region7: #{_identity_small.1} parent=0 // pred_check_branch
    %13 = sbr.rel (0) target = $region9
  $region8: #{_identity_small.1} parent=0 // pred_region
    _
  $region9: #{_identity_small.1} parent=0 // pred_fallthru
    _
  // Predicated region
  $region10: #{_identity_small.1} parent=0 // pred_check
    _
  $region11: #{_identity_small.1} parent=0 // pred_check_branch
    %15 = sbr.rel (0) target = $region13
  $region12: #{_identity_small.1} parent=0 // pred_region
    _
  $region13: #{_identity_small.1} parent=0 // pred_fallthru
    _

</llo_original>
